<compile_context>
chip_gen: v7x
topology: tpu7x:2x2x1
jax: 0.10.0
libtpu: 0.0.40
codegen_flags: <defaults>
</compile_context>

<pallas_src>
import math

import jax
import jax.numpy as jnp
from jax import lax
from jax.experimental import pallas as pl
from jax.experimental.pallas import tpu as pltpu

_LANES = 128
_WORD = 4                                   # kernel always operates on 32-bit words
_VMEM_BUDGET_BYTES = 28 * 1024 * 1024       # double-buffered output block budget (v7x-safe)
_TARGET_STEPS = 4                           # >= 2 TCs on v7x + pipeline overlap
_MIN_TILE_BYTES = 1 << 20                   # keep per-step writeback >= ~1 MiB


def _round_up(x: int, m: int) -> int:
    return ((x + m - 1) // m) * m


def _repeat_kernel(src_ref, out_ref):
    # src_ref: (rows, 128) lane-dense 32-bit slab (same block every grid step,
    #          stays resident in VMEM).
    # out_ref: (tb, rows, 128) one batch tile of the output.
    out_ref[...] = jnp.broadcast_to(src_ref[...], out_ref.shape)


def _choose_batch_tile(batch_size: int, per_batch_bytes: int, batch_tile: int) -> int:
    # (a) VMEM: keep the double-buffered output block within the per-core budget.
    tb = min(batch_tile, max(1, _VMEM_BUDGET_BYTES // (2 * per_batch_bytes)))
    # (b) Prefer >= _TARGET_STEPS grid steps (v7x 2-TC sharding + DMA overlap)
    #     as long as each step still writes a reasonably large block.
    split = _round_up(pl.cdiv(batch_size, _TARGET_STEPS), 8)
    if split * per_batch_bytes >= _MIN_TILE_BYTES:
        tb = min(tb, split)
    tb = max(1, min(tb, batch_size))
    # (c) Balance tiles (same step count) so the last tile isn't mostly padding.
    steps = pl.cdiv(batch_size, tb)
    tb = max(1, min(tb, _round_up(pl.cdiv(batch_size, steps), 8)))
    return tb


def fake_model_forward(
    x: jax.Array,
    output: jax.Array,
    *,
    batch_tile: int = 2048,
    min_pallas_batch: int = 64,
) -> jax.Array:
    """Pallas equivalent of FakeModel.forward.

    x:      any array whose leading axis is the batch size (values unused).
    output: the stored tensor (any shape); result is (B, *output.shape).
    """
    batch_size = x.shape[0]
    out_shape = output.shape
    total = math.prod(out_shape)
    itemsize = output.dtype.itemsize

    def _xla_broadcast():
        return jnp.broadcast_to(output[None], (batch_size,) + out_shape)

    # Small batches: a plain XLA broadcast beats a custom-call launch and can
    # fuse into downstream consumers.
    if batch_size < max(min_pallas_batch, 1) or total == 0:
        return _xla_broadcast()

    # Map the stored tensor onto a lane-dense 32-bit (rows, 128) slab.
    if itemsize == _WORD:
        if total % _LANES != 0:
            return _xla_broadcast()
        rows = total // _LANES
        slab = output.reshape(rows, _LANES)
        kernel_dtype = output.dtype
        pack = None
    elif (
        itemsize in (1, 2)
        and output.dtype != jnp.bool_
        and (total * itemsize) % (_WORD * _LANES) == 0
    ):
        # Pack consecutive elements into uint32 words so blocks stay at the
        # 32-bit (8,128) tiling (full-width unmasked vst, dense writeback DMA).
        k = _WORD // itemsize
        rows = (total * itemsize) // (_WORD * _LANES)
        slab = lax.bitcast_convert_type(output.reshape(rows, _LANES, k), jnp.uint32)
        kernel_dtype = jnp.uint32
        pack = k
    else:
        # TODO(synk): 64-bit / bool / non-lane-divisible stored tensors keep the XLA path.
        return _xla_broadcast()

    per_batch_bytes = rows * _LANES * _WORD          # bytes per output batch row
    tb = _choose_batch_tile(batch_size, per_batch_bytes, batch_tile)
    grid = (pl.cdiv(batch_size, tb),)

    block_bytes = tb * per_batch_bytes
    slab_bytes = per_batch_bytes
    # Double-buffered output + double-buffered input slab + margin; floor at
    # 16 MiB (<= every generation's default), ceiling ~30 MiB (v7x-safe).
    vmem_limit = max(2 * block_bytes + 2 * slab_bytes + (2 << 20), 16 << 20)

    result = pl.pallas_call(
        _repeat_kernel,
        out_shape=jax.ShapeDtypeStruct((batch_size, rows, _LANES), kernel_dtype),
        grid=grid,
        in_specs=[
            # Full slab every step (block == full array dims); loaded once.
            pl.BlockSpec((rows, _LANES), lambda b: (0, 0)),
        ],
        out_specs=pl.BlockSpec((tb, rows, _LANES), lambda b: (b, 0, 0)),
        compiler_params=pltpu.CompilerParams(
            dimension_semantics=("parallel",),
            vmem_limit_bytes=int(vmem_limit),
        ),
        cost_estimate=pl.CostEstimate(
            flops=0,
            transcendentals=0,
            bytes_accessed=batch_size * slab_bytes + slab_bytes,
        ),
    )(slab)

    if pack is not None:
        result = lax.bitcast_convert_type(result, output.dtype)  # (B, rows, 128, k)
    return result.reshape((batch_size,) + out_shape)


def _reference(x: jax.Array, output: jax.Array) -> jax.Array:
    return jnp.broadcast_to(output[None], (x.shape[0],) + output.shape)


if __name__ == "__main__":
    key = jax.random.PRNGKey(0)
    k_out, k_x = jax.random.split(key)

    # Deterministic "stored output" parameter (the tensor passed to __init__).
    stored_output = jax.random.normal(k_out, (4, 16, 16), dtype=jnp.float32)

    # --- Case 1: module-default small batch (B=2) — XLA broadcast fast path. ---
    x_small = jax.random.normal(k_x, (2, 4, 16, 16), dtype=jnp.float32)
    r_small = fake_model_forward(x_small, stored_output)
    jax.block_until_ready(r_small)
    e_small = _reference(x_small, stored_output)
    assert r_small.shape == e_small.shape and r_small.dtype == e_small.dtype
    assert bool(jnp.array_equal(r_small, e_small)), "small-batch mismatch"

    # --- Case 2: same small batch, Pallas path forced (kernel must run). ---
    r_forced = fake_model_forward(x_small, stored_output, min_pallas_batch=0)
    jax.block_until_ready(r_forced)
    assert r_forced.shape == e_small.shape and r_forced.dtype == e_small.dtype
    assert bool(jnp.array_equal(r_forced, e_small)), "forced-pallas mismatch"

    # --- Case 3: multi-step grid with a re-balanced partial last tile
    #     (B=200, batch_tile=128 -> tb=104, 2 grid steps). ---
    x_big = jnp.zeros((200, 4, 16, 16), dtype=jnp.float32)  # values unused
    r_big = fake_model_forward(x_big, stored_output, batch_tile=128, min_pallas_batch=0)
    jax.block_until_ready(r_big)
    e_big = _reference(x_big, stored_output)
    assert r_big.shape == e_big.shape and r_big.dtype == e_big.dtype
    assert bool(jnp.array_equal(r_big, e_big)), "batched-grid mismatch"

    # --- Case 4: sub-32-bit stored tensor -> packed-uint32 lane-dense path. ---
    stored_bf16 = jax.random.normal(k_out, (8, 16, 16), dtype=jnp.float32).astype(jnp.bfloat16)
    x_bf16 = jnp.zeros((16, 8, 16, 16), dtype=jnp.bfloat16)  # values unused
    r_bf16 = fake_model_forward(x_bf16, stored_bf16, min_pallas_batch=0)
    jax.block_until_ready(r_bf16)
    e_bf16 = _reference(x_bf16, stored_bf16)
    assert r_bf16.shape == e_bf16.shape and r_bf16.dtype == e_bf16.dtype
    assert bool(jnp.array_equal(r_bf16, e_bf16)), "bf16-packed mismatch"

    print("KERNEL_OK")
</pallas_src>

<mosaic_0001>
module attributes {stable_mosaic.version = 11 : i64} {
  func.func @_repeat_kernel(%arg0: i32, %arg1: memref<8x128xf32, #tpu.memory_space<vmem>>, %arg2: memref<2x8x128xf32, #tpu.memory_space<vmem>>) attributes {dimension_semantics = [#tpu.dimension_semantics<parallel>], iteration_bounds = array<i64: 1>, scalar_prefetch = 0 : i64, scratch_operands = 0 : i64, tpu.core_type = #tpu.core_type<tc>, window_params = [{pipeline_mode = #tpu.pipeline_mode<synchronous>, transform_indices = @transform_0, window_bounds = array<i64: 8, 128>}, {transform_indices = @transform_1, window_bounds = array<i64: 2, 8, 128>}]} {
    %c0 = arith.constant 0 : index
    %c0_0 = arith.constant 0 : index
    %0 = vector.load %arg1[%c0, %c0_0] : memref<8x128xf32, #tpu.memory_space<vmem>>, vector<8x128xf32>
    %1 = vector.shape_cast %0 : vector<8x128xf32> to vector<1x8x128xf32>
    %2 = vector.broadcast %1 : vector<1x8x128xf32> to vector<2x8x128xf32>
    %c0_1 = arith.constant 0 : index
    %c0_2 = arith.constant 0 : index
    %c0_3 = arith.constant 0 : index
    %3 = vector.load %arg2[%c0_1, %c0_2, %c0_3] : memref<2x8x128xf32, #tpu.memory_space<vmem>>, vector<2x8x128xf32>
    tpu.vector_store %arg2[%c0_1, %c0_2, %c0_3], %2 {strides = array<i32>} : memref<2x8x128xf32, #tpu.memory_space<vmem>>, vector<2x8x128xf32>,
    return
  }
  func.func @transform_0(%arg0: i32) -> (i32, i32) {
    %c0_i32 = arith.constant 0 : i32
    %c0_i32_0 = arith.constant 0 : i32
    %c0_i32_1 = arith.constant 0 : i32
    return %c0_i32, %c0_i32_0 : i32, i32
  }
  func.func @transform_1(%arg0: i32) -> (i32, i32, i32) {
    %c0_i32 = arith.constant 0 : i32
    %c0_i32_0 = arith.constant 0 : i32
    %c0_i32_1 = arith.constant 0 : i32
    return %arg0, %c0_i32, %c0_i32_0 : i32, i32, i32
  }
}

</mosaic_0001>

<llo_original>
// kernel: tpu_custom_call.1
$region0: #{tpu_custom_call.1}
  #allocation0 [shape = 'u32[]', space=smem, size = 0x4, offset = 0x4, fixed_abs, tag = 'smem constant byte address 0x4 - core index']
  #allocation1 [shape = 'u32[144,128]{1,0:T(1,128)}', space=vmem, size = 0x12000, scoped, tag = 'internal scratch']
  %s0 = inlined_call_operand.hbm [shape: f32[8,128], index: 0, kind: input, shape index: {}]
  %s1 = inlined_call_operand.hbm [shape: f32[2,8,128], index: 1, kind: output, shape index: {}]
  %s2 = sld [smem:[#allocation0]]
  $region18: #{tpu_custom_call.1} parent=0
    _
  %s4 = ssub.s32 1, %s2
  %s5 = scalar_select 0, %s4, %s2
  $region1: #{tpu_custom_call.1} parent=0
    #allocation2 [shape = 'u8[4096]{0}', space=vmem, size = 0x1000, scoped, tag = 'input window, operand 0, single buffered']
    #allocation3 [shape = 's32[1]{0}', space=sflag, size = 0x4, scoped, tag = 'scoped memory for tpu_custom_call.1']
    #allocation4 [shape = 's32[1]{0}', space=sflag, size = 0x4, scoped, tag = 'scoped memory for tpu_custom_call.1']
    #allocation5 [shape = 'u8[8192]{0}', space=vmem, size = 0x2000, scoped, tag = 'output window, operand 0, single buffered']
    %6 = vsyncpa [#allocation3], 0
    %7 = vsyncpa [#allocation4], 0
    // Predicated region
    $region2: #{tpu_custom_call.1} parent=1 // pred_check
      _
    $region3: #{tpu_custom_call.1} parent=1 // pred_check_branch
      %9 = sbr.rel (0) target = $region5
    $region4: #{tpu_custom_call.1} parent=1 // pred_region
      %s11 = ssub.s32 128, 128
      %12 = vsyncadd [#allocation3], %s11
      %s14 = sshll.u32 [#allocation2], 4
      %s15 = int_to_ptr.vmem [resolvable:$true] %s14
      %17 = dma.hbm_to_vmem [thread:$0]  %s0, 128, %s15, [#allocation3]
    $region5: #{tpu_custom_call.1} parent=1 // pred_fallthru
      _
    // Predicated region
    $region6: #{tpu_custom_call.1} parent=1 // pred_check
      _
    $region7: #{tpu_custom_call.1} parent=1 // pred_check_branch
      %19 = sbr.rel (0) target = $region9
    $region8: #{tpu_custom_call.1} parent=1 // pred_region
      %20 = dma.done [#allocation3], 128
    $region9: #{tpu_custom_call.1} parent=1 // pred_fallthru
      _
    %v21 = vld [vmem:[#allocation2] sm:$0xff]
    %22 = vst [vmem:[#allocation5] sm:$0xff] %v21
    %23 = vst [vmem:[#allocation5 + $0x8] sm:$0xff] %v21
    // Predicated region
    $region10: #{tpu_custom_call.1} parent=1 // pred_check
      _
    $region11: #{tpu_custom_call.1} parent=1 // pred_check_branch
      %25 = sbr.rel (0) target = $region13
    $region12: #{tpu_custom_call.1} parent=1 // pred_region
      %s27 = ssub.s32 256, 256
      %28 = vsyncadd [#allocation4], %s27
      %s29 = sshll.u32 [#allocation5], 4
      %s30 = int_to_ptr.vmem [resolvable:$true] %s29
      %35 = dma.vmem_to_hbm [thread:$0]  %s30, 256, %s1, [#allocation4], 128, 128, 8
    $region13: #{tpu_custom_call.1} parent=1 // pred_fallthru
      _
    // Predicated region
    $region14: #{tpu_custom_call.1} parent=1 // pred_check
      _
    $region15: #{tpu_custom_call.1} parent=1 // pred_check_branch
      %37 = sbr.rel (0) target = $region17
    $region16: #{tpu_custom_call.1} parent=1 // pred_region
      %38 = dma.done [#allocation4], 256
    $region17: #{tpu_custom_call.1} parent=1 // pred_fallthru
      _
    %39 = vsyncpa [#allocation3], 1
    %40 = vsyncpa [#allocation4], 1

</llo_original>
